<compile_context>
chip_gen: v7x
topology: tpu7x:2x2x1
jax: 0.10.0
libtpu: 0.0.40
codegen_flags: <defaults>
</compile_context>

<pallas_src>
import math
from functools import partial

import jax
import jax.numpy as jnp
from jax import lax
from jax.experimental import pallas as pl
from jax.experimental.pallas import tpu as pltpu

_LANE = 128
_INV_SQRT2 = 0.7071067811865476


# ----------------------------------------------------------------------------- helpers
def _round_up(v, m):
    return (v + m - 1) // m * m


def _pad2(a, rows, cols):
    pr, pc = rows - a.shape[0], cols - a.shape[1]
    if pr or pc:
        a = jnp.pad(a, ((0, pr), (0, pc)))
    return a


def _tpu_info():
    """(per-core VMEM capacity bytes, is_multi_tensorcore_chip)."""
    vmem_cap = 128 * 1024 * 1024          # v5e / v6e physical
    multi_tc = False
    try:
        kind = jax.devices()[0].device_kind.lower()
        multi_tc = "v7" in kind
        if multi_tc:
            vmem_cap = 64 * 1024 * 1024   # v7x: 64 MiB per TC
    except Exception:
        pass
    try:
        info = pltpu.get_tpu_info()
        cap = getattr(info, "vmem_capacity_bytes", None)
        if cap:
            vmem_cap = int(cap)
    except Exception:
        pass
    return vmem_cap, multi_tc


def _vmem_resident_bytes(tm, D_p, H_p, O_p, xi, ci, oi):
    # x / out tiles double-buffered; weights get 2 pipeline buffers but are DMA'd once.
    return (2 * tm * D_p * xi
            + 2 * D_p * H_p * ci
            + 2 * 8 * H_p * 4
            + 2 * H_p * O_p * ci
            + 2 * 8 * O_p * 4
            + 2 * tm * O_p * oi
            + tm * H_p * 4)               # f32 hidden intermediate (internal scratch)


def _vmem_ktiled_bytes(tm, th, D_p, O_p, xi, ci, oi):
    return (2 * tm * D_p * xi
            + 2 * D_p * th * ci
            + 2 * 8 * th * 4
            + 2 * th * O_p * ci
            + 2 * 8 * O_p * 4
            + 2 * tm * O_p * oi
            + tm * O_p * 4                # f32 accumulator scratch
            + tm * th * 4)                # f32 hidden intermediate


def _pick_th(H_p, th_cap):
    """Largest multiple of 128 that divides H_p and is <= th_cap."""
    best, t = _LANE, _LANE
    while t <= min(th_cap, H_p):
        if H_p % t == 0:
            best = t
        t += _LANE
    return best


# ----------------------------------------------------------------------------- kernels
def _gelu_f32(h):
    # exact GELU (erf form) == nn.GELU(approximate='none'); f32 on the EUP/VPU
    return 0.5 * h * (1.0 + lax.erf(h * jnp.float32(_INV_SQRT2)))


def _mlp_kernel_resident(x_ref, w1_ref, b1_ref, w2_ref, b2_ref, o_ref):
    # Weights fully VMEM-resident: no k axis, no accumulator.
    cd = w1_ref.dtype
    h = jnp.dot(x_ref[...].astype(cd), w1_ref[...], preferred_element_type=jnp.float32)
    h = _gelu_f32(h + b1_ref[...])
    o = jnp.dot(h.astype(cd), w2_ref[...], preferred_element_type=jnp.float32)
    o_ref[...] = (o + b2_ref[...]).astype(o_ref.dtype)


def _mlp_kernel_ktiled(x_ref, w1_ref, b1_ref, w2_ref, b2_ref, o_ref, acc_ref):
    # H-tiled fallback: f32 accumulator persists across the (trailing, "arbitrary") k axis.
    cd = w1_ref.dtype
    k = pl.program_id(1)

    @pl.when(k == 0)
    def _init():
        acc_ref[...] = jnp.zeros_like(acc_ref)

    h = jnp.dot(x_ref[...].astype(cd), w1_ref[...], preferred_element_type=jnp.float32)
    h = _gelu_f32(h + b1_ref[...])
    acc_ref[...] += jnp.dot(h.astype(cd), w2_ref[...],
                            preferred_element_type=jnp.float32)

    @pl.when(k == pl.num_programs(1) - 1)
    def _finalize():
        o_ref[...] = (acc_ref[...] + b2_ref[...]).astype(o_ref.dtype)


# ----------------------------------------------------------------------------- wrapper
def prepare_mlp_params(w1, b1, w2, b2, compute_dtype=jnp.bfloat16):
    """One-time pad (lane-dense, multiples of 128) + cast of the MLP parameters."""
    D, H = w1.shape
    O = w2.shape[1]
    D_p, H_p, O_p = (_round_up(d, _LANE) for d in (D, H, O))
    w1_p = _pad2(w1, D_p, H_p).astype(compute_dtype)
    w2_p = _pad2(w2, H_p, O_p).astype(compute_dtype)
    b1_p = _pad2(b1.reshape(1, H), 1, H_p).astype(jnp.float32)
    b2_p = _pad2(b2.reshape(1, O), 1, O_p).astype(jnp.float32)
    return w1_p, b1_p, w2_p, b2_p, (D, H, O)


def mlp_apply(x, w1_p, b1_p, w2_p, b2_p, dims, *, tm=None, th=None,
              out_dtype=None, force_ktiled=False):
    """x: (..., D); padded params from prepare_mlp_params. Returns (..., O)."""
    D, H, O = dims
    assert x.shape[-1] == D, "last dim of x must equal in_features"
    lead = x.shape[:-1]
    M = 1
    for s in lead:
        M *= int(s)
    out_dtype = out_dtype or x.dtype

    compute_dtype = w1_p.dtype
    D_p, H_p = w1_p.shape
    O_p = w2_p.shape[1]
    xi = jnp.dtype(x.dtype).itemsize
    ci = jnp.dtype(compute_dtype).itemsize
    oi = jnp.dtype(out_dtype).itemsize

    vmem_cap, multi_tc = _tpu_info()
    budget = int(0.72 * vmem_cap)

    # bf16 packs 16 sublanes per vreg -> 16-row alignment; f32 -> 8.
    row_align = 16 if ci < 4 else 8
    M_a = _round_up(max(M, 1), row_align)

    # Per-generation default row tile (ridge point vs VMEM): 512 on 64 MiB parts (v7x),
    # 1024 on 128 MiB parts (v5e/v6e).
    tm_cap = tm if tm is not None else (512 if vmem_cap <= 64 * 1024 * 1024 else 1024)
    tm_eff = min(_round_up(tm_cap, row_align), M_a)

    # >=2 row tiles so the "parallel" axis shards across both v7x TensorCores.
    if multi_tc and M_a >= 2 * row_align and -(-M_a // tm_eff) == 1:
        tm_eff = _round_up(-(-M_a // 2), row_align)

    # Prefer the weight-resident form; shrink tm to fit, else fall back to H-tiling.
    resident_tm = None
    if not force_ktiled:
        cand = tm_eff
        while True:
            if _vmem_resident_bytes(cand, D_p, H_p, O_p, xi, ci, oi) <= budget:
                resident_tm = cand
                break
            if cand <= row_align:
                break
            cand = max(row_align, _round_up(cand // 2, row_align))

    if resident_tm is not None:
        tm_eff = resident_tm
        n_row = -(-M_a // tm_eff)
        M_p = n_row * tm_eff
        grid = (n_row,)
        vmem_est = _vmem_resident_bytes(tm_eff, D_p, H_p, O_p, xi, ci, oi)
        kernel = _mlp_kernel_resident
        in_specs = [
            pl.BlockSpec((tm_eff, D_p), lambda i: (i, 0)),   # x rows (streamed)
            pl.BlockSpec((D_p, H_p), lambda i: (0, 0)),      # w1 resident (constant idx)
            pl.BlockSpec((1, H_p), lambda i: (0, 0)),        # b1 resident
            pl.BlockSpec((H_p, O_p), lambda i: (0, 0)),      # w2 resident
            pl.BlockSpec((1, O_p), lambda i: (0, 0)),        # b2 resident
        ]
        out_spec = pl.BlockSpec((tm_eff, O_p), lambda i: (i, 0))
        scratch = []
        dim_sem = ("parallel",)
        bytes_accessed = (M_p * D_p * xi + (D_p * H_p + H_p * O_p) * ci
                          + 8 * (H_p + O_p) * 4 + M_p * O_p * oi)
    else:
        th_cap = th if th is not None else 1024
        th_eff = _pick_th(H_p, th_cap)
        while (_vmem_ktiled_bytes(tm_eff, th_eff, D_p, O_p, xi, ci, oi) > budget
               and tm_eff > row_align):
            tm_eff = max(row_align, _round_up(tm_eff // 2, row_align))
        n_row = -(-M_a // tm_eff)
        M_p = n_row * tm_eff
        n_k = H_p // th_eff
        grid = (n_row, n_k)
        vmem_est = _vmem_ktiled_bytes(tm_eff, th_eff, D_p, O_p, xi, ci, oi)
        kernel = _mlp_kernel_ktiled
        in_specs = [
            pl.BlockSpec((tm_eff, D_p), lambda i, k: (i, 0)),   # x rows (resident over k)
            pl.BlockSpec((D_p, th_eff), lambda i, k: (0, k)),   # w1 H-slice (streamed)
            pl.BlockSpec((1, th_eff), lambda i, k: (0, k)),     # b1 H-slice
            pl.BlockSpec((th_eff, O_p), lambda i, k: (k, 0)),   # w2 H-slice (streamed)
            pl.BlockSpec((1, O_p), lambda i, k: (0, 0)),        # b2
        ]
        out_spec = pl.BlockSpec((tm_eff, O_p), lambda i, k: (i, 0))
        scratch = [pltpu.VMEM((tm_eff, O_p), jnp.float32)]
        dim_sem = ("parallel", "arbitrary")
        # weights re-streamed once per row tile; accumulator RMW per extra k step.
        bytes_accessed = (M_p * D_p * xi
                          + n_row * ((D_p * H_p + H_p * O_p) * ci + 8 * (H_p + O_p) * 4)
                          + M_p * O_p * oi
                          + 2 * M_p * O_p * 4 * max(n_k - 1, 0))

    # Never set the limit to exactly physical VMEM; ~0.85x leaves compiler scratch room.
    vmem_limit = int(min(max(vmem_est + (2 << 20), 16 << 20), int(0.85 * vmem_cap)))

    cost = pl.CostEstimate(
        flops=2 * M_p * (D_p * H_p + H_p * O_p),
        transcendentals=M_p * H_p,
        bytes_accessed=int(bytes_accessed),
    )

    # x stays in its original dtype (kernel casts to the MXU input dtype); pad only
    # if the row/lane counts require it.
    x_p = _pad2(x.reshape(M, D), M_p, D_p)

    out_p = pl.pallas_call(
        kernel,
        out_shape=jax.ShapeDtypeStruct((M_p, O_p), out_dtype),
        grid_spec=pltpu.PrefetchScalarGridSpec(
            num_scalar_prefetch=0,
            grid=grid,
            in_specs=in_specs,
            out_specs=out_spec,
            scratch_shapes=scratch,
        ),
        compiler_params=pltpu.CompilerParams(
            dimension_semantics=dim_sem,
            vmem_limit_bytes=vmem_limit,
        ),
        cost_estimate=cost,
    )(x_p, w1_p, b1_p, w2_p, b2_p)

    return out_p[:M, :O].reshape(*lead, O)


def mlp_pallas(x, w1, b1, w2, b2, *, compute_dtype=jnp.bfloat16, out_dtype=None,
               tm=None, th=None, force_ktiled=False):
    """Convenience wrapper: pads/casts params every call (prefer prepare_mlp_params)."""
    w1_p, b1_p, w2_p, b2_p, dims = prepare_mlp_params(w1, b1, w2, b2, compute_dtype)
    return mlp_apply(x, w1_p, b1_p, w2_p, b2_p, dims, tm=tm, th=th,
                     out_dtype=out_dtype, force_ktiled=force_ktiled)


# ----------------------------------------------------------------------------- test
def _init_linear(key, fan_in, fan_out):
    # deterministic stand-in for nn.Linear default init (uniform +/- 1/sqrt(fan_in))
    kw, kb = jax.random.split(key)
    bound = 1.0 / math.sqrt(fan_in)
    w = jax.random.uniform(kw, (fan_in, fan_out), jnp.float32, -bound, bound)
    b = jax.random.uniform(kb, (fan_out,), jnp.float32, -bound, bound)
    return w, b


def _ref_mlp(x, w1, b1, w2, b2):
    h = x @ w1 + b1
    h = 0.5 * h * (1.0 + lax.erf(h / jnp.sqrt(2.0)))
    return h @ w2 + b2


if __name__ == "__main__":
    B, N = 2, 8                        # batch, tokens
    D_IN, D_HID, D_OUT = 32, 64, 32    # in_features, hidden_features, out_features

    key = jax.random.PRNGKey(0)
    kx, k1, k2, k3 = jax.random.split(key, 4)

    x = jax.random.normal(kx, (B, N, D_IN), jnp.float32)
    w1, b1 = _init_linear(k1, D_IN, D_HID)
    w2, b2 = _init_linear(k2, D_HID, D_OUT)

    ref = _ref_mlp(x, w1, b1, w2, b2)

    # bf16 MXU path (production config): params padded/cast ONCE, apply jitted.
    w1_p, b1_p, w2_p, b2_p, dims = prepare_mlp_params(w1, b1, w2, b2)
    fwd = jax.jit(lambda xx, a, bb, c, d: mlp_apply(xx, a, bb, c, d, dims))
    out_bf16 = jax.block_until_ready(fwd(x, w1_p, b1_p, w2_p, b2_p))
    assert out_bf16.shape == (B, N, D_OUT)
    assert jnp.allclose(out_bf16, ref, atol=5e-2, rtol=5e-2), "bf16 path mismatch"

    # f32 path: tight check of the weight-resident kernel structure.
    out_f32 = jax.block_until_ready(
        mlp_pallas(x, w1, b1, w2, b2, compute_dtype=jnp.float32))
    assert jnp.allclose(out_f32, ref, atol=1e-4, rtol=1e-4), "f32 resident mismatch"

    # k-tiled fallback path (accumulator over the H axis) exercised on a wider hidden dim.
    w1b, b1b = _init_linear(k3, D_IN, 256)
    w2b, b2b = _init_linear(k2, 256, D_OUT)
    ref_kt = _ref_mlp(x, w1b, b1b, w2b, b2b)
    out_kt = jax.block_until_ready(
        mlp_pallas(x, w1b, b1b, w2b, b2b, compute_dtype=jnp.float32,
                   force_ktiled=True, tm=8, th=128))
    assert jnp.allclose(out_kt, ref_kt, atol=1e-4, rtol=1e-4), "f32 k-tiled mismatch"

    print("KERNEL_OK")
</pallas_src>

<mosaic_0001>
module attributes {stable_mosaic.version = 11 : i64} {
  func.func @_mlp_kernel_resident(%arg0: i32, %arg1: memref<16x128xf32, #tpu.memory_space<vmem>>, %arg2: memref<128x128xbf16, #tpu.memory_space<vmem>>, %arg3: memref<1x128xf32, #tpu.memory_space<vmem>>, %arg4: memref<128x128xbf16, #tpu.memory_space<vmem>>, %arg5: memref<1x128xf32, #tpu.memory_space<vmem>>, %arg6: memref<16x128xf32, #tpu.memory_space<vmem>>) attributes {dimension_semantics = [#tpu.dimension_semantics<parallel>], iteration_bounds = array<i64: 1>, scalar_prefetch = 0 : i64, scratch_operands = 0 : i64, tpu.core_type = #tpu.core_type<tc>, window_params = [{transform_indices = @transform_0, window_bounds = array<i64: 16, 128>}, {pipeline_mode = #tpu.pipeline_mode<synchronous>, transform_indices = @transform_1, window_bounds = array<i64: 128, 128>}, {pipeline_mode = #tpu.pipeline_mode<synchronous>, transform_indices = @transform_2, window_bounds = array<i64: 1, 128>}, {pipeline_mode = #tpu.pipeline_mode<synchronous>, transform_indices = @transform_3, window_bounds = array<i64: 128, 128>}, {pipeline_mode = #tpu.pipeline_mode<synchronous>, transform_indices = @transform_4, window_bounds = array<i64: 1, 128>}, {transform_indices = @transform_5, window_bounds = array<i64: 16, 128>}]} {
    %c0 = arith.constant 0 : index
    %c0_0 = arith.constant 0 : index
    %0 = vector.load %arg1[%c0, %c0_0] : memref<16x128xf32, #tpu.memory_space<vmem>>, vector<16x128xf32>
    %1 = arith.truncf %0 : vector<16x128xf32> to vector<16x128xbf16>
    %c0_1 = arith.constant 0 : index
    %c0_2 = arith.constant 0 : index
    %2 = vector.load %arg2[%c0_1, %c0_2] : memref<128x128xbf16, #tpu.memory_space<vmem>>, vector<128x128xbf16>
    %cst = arith.constant dense<0.000000e+00> : vector<16x128xf32>
    %3 = tpu.matmul %1, %2, %cst {dimension_numbers = #tpu.dot_dimension_numbers<[1], [0], [0], [1], [0, 0, 1, 1], [], []>} : vector<16x128xbf16>, vector<128x128xbf16>, vector<16x128xf32> -> vector<16x128xf32>
    %c0_3 = arith.constant 0 : index
    %c0_4 = arith.constant 0 : index
    %4 = vector.load %arg3[%c0_3, %c0_4] : memref<1x128xf32, #tpu.memory_space<vmem>>, vector<1x128xf32>
    %5 = vector.broadcast %4 : vector<1x128xf32> to vector<16x128xf32>
    %6 = arith.addf %3, %5 : vector<16x128xf32>
    %cst_5 = arith.constant 5.000000e-01 : f32
    %7 = vector.broadcast %cst_5 : f32 to vector<16x128xf32>
    %8 = arith.mulf %7, %6 : vector<16x128xf32>
    %cst_6 = arith.constant 0.707106769 : f32
    %9 = vector.broadcast %cst_6 : f32 to vector<16x128xf32>
    %10 = arith.mulf %6, %9 : vector<16x128xf32>
    %11 = math.erf %10 : vector<16x128xf32>
    %cst_7 = arith.constant 1.000000e+00 : f32
    %12 = vector.broadcast %cst_7 : f32 to vector<16x128xf32>
    %13 = arith.addf %12, %11 : vector<16x128xf32>
    %14 = arith.mulf %8, %13 : vector<16x128xf32>
    %15 = arith.truncf %14 : vector<16x128xf32> to vector<16x128xbf16>
    %c0_8 = arith.constant 0 : index
    %c0_9 = arith.constant 0 : index
    %16 = vector.load %arg4[%c0_8, %c0_9] : memref<128x128xbf16, #tpu.memory_space<vmem>>, vector<128x128xbf16>
    %cst_10 = arith.constant dense<0.000000e+00> : vector<16x128xf32>
    %17 = tpu.matmul %15, %16, %cst_10 {dimension_numbers = #tpu.dot_dimension_numbers<[1], [0], [0], [1], [0, 0, 1, 1], [], []>} : vector<16x128xbf16>, vector<128x128xbf16>, vector<16x128xf32> -> vector<16x128xf32>
    %c0_11 = arith.constant 0 : index
    %c0_12 = arith.constant 0 : index
    %18 = vector.load %arg5[%c0_11, %c0_12] : memref<1x128xf32, #tpu.memory_space<vmem>>, vector<1x128xf32>
    %19 = vector.broadcast %18 : vector<1x128xf32> to vector<16x128xf32>
    %20 = arith.addf %17, %19 : vector<16x128xf32>
    %c0_13 = arith.constant 0 : index
    %c0_14 = arith.constant 0 : index
    %21 = vector.load %arg6[%c0_13, %c0_14] : memref<16x128xf32, #tpu.memory_space<vmem>>, vector<16x128xf32>
    tpu.vector_store %arg6[%c0_13, %c0_14], %20 {strides = array<i32>} : memref<16x128xf32, #tpu.memory_space<vmem>>, vector<16x128xf32>,
    return
  }
  func.func @transform_0(%arg0: i32) -> (i32, i32) {
    %c0_i32 = arith.constant 0 : i32
    %c0_i32_0 = arith.constant 0 : i32
    return %arg0, %c0_i32 : i32, i32
  }
  func.func @transform_1(%arg0: i32) -> (i32, i32) {
    %c0_i32 = arith.constant 0 : i32
    %c0_i32_0 = arith.constant 0 : i32
    %c0_i32_1 = arith.constant 0 : i32
    return %c0_i32, %c0_i32_0 : i32, i32
  }
  func.func @transform_2(%arg0: i32) -> (i32, i32) {
    %c0_i32 = arith.constant 0 : i32
    %c0_i32_0 = arith.constant 0 : i32
    %c0_i32_1 = arith.constant 0 : i32
    return %c0_i32, %c0_i32_0 : i32, i32
  }
  func.func @transform_3(%arg0: i32) -> (i32, i32) {
    %c0_i32 = arith.constant 0 : i32
    %c0_i32_0 = arith.constant 0 : i32
    %c0_i32_1 = arith.constant 0 : i32
    return %c0_i32, %c0_i32_0 : i32, i32
  }
  func.func @transform_4(%arg0: i32) -> (i32, i32) {
    %c0_i32 = arith.constant 0 : i32
    %c0_i32_0 = arith.constant 0 : i32
    %c0_i32_1 = arith.constant 0 : i32
    return %c0_i32, %c0_i32_0 : i32, i32
  }
  func.func @transform_5(%arg0: i32) -> (i32, i32) {
    %c0_i32 = arith.constant 0 : i32
    %c0_i32_0 = arith.constant 0 : i32
    return %arg0, %c0_i32 : i32, i32
  }
}

</mosaic_0001>

<llo_original>
// kernel: _lambda_.1
$region0: #{_lambda_.1}
  #allocation0 [shape = 'u32[]', space=smem, size = 0x4, offset = 0x4, fixed_abs, tag = 'smem constant byte address 0x4 - core index']
  #allocation1 [shape = 'u32[144,128]{1,0:T(1,128)}', space=vmem, size = 0x12000, scoped, tag = 'internal scratch']
  %s0 = inlined_call_operand.vmem [shape: f32[16,128], index: 0, kind: input, shape index: {}]
  %s1 = inlined_call_operand.hbm [shape: bf16[128,128], index: 1, kind: input, shape index: {}]
  %s2 = inlined_call_operand.vmem [shape: f32[1,128], index: 2, kind: input, shape index: {}]
  %s3 = inlined_call_operand.hbm [shape: bf16[128,128], index: 3, kind: input, shape index: {}]
  %s4 = inlined_call_operand.vmem [shape: f32[1,128], index: 4, kind: input, shape index: {}]
  %s5 = inlined_call_operand.vmem [shape: f32[16,128], index: 5, kind: output, shape index: {}]
  %s6 = sld [smem:[#allocation0]]
  $region38: #{_lambda_.1} parent=0
    _
  %s8 = ssub.s32 1, %s6
  %s9 = scalar_select 0, %s8, %s6
  $region1: #{_lambda_.1} parent=0
    #allocation2 [shape = 'u8[32768]{0}', space=vmem, size = 0x8000, scoped, tag = 'input window, operand 1, single buffered']
    #allocation3 [shape = 's32[1]{0}', space=sflag, size = 0x4, scoped, tag = 'scoped memory for _lambda_.1']
    #allocation4 [shape = 'u8[32768]{0}', space=vmem, size = 0x8000, scoped, tag = 'input window, operand 3, single buffered']
    #allocation5 [shape = 's32[1]{0}', space=sflag, size = 0x4, scoped, tag = 'scoped memory for _lambda_.1']
    %10 = vsyncpa [#allocation3], 0
    %11 = vsyncpa [#allocation5], 0
    // Predicated region
    $region2: #{_lambda_.1} parent=1 // pred_check
      _
    $region3: #{_lambda_.1} parent=1 // pred_check_branch
      %13 = sbr.rel (0) target = $region5
    $region4: #{_lambda_.1} parent=1 // pred_region
      _
    $region5: #{_lambda_.1} parent=1 // pred_fallthru
      _
    // Predicated region
    $region6: #{_lambda_.1} parent=1 // pred_check
      _
    $region7: #{_lambda_.1} parent=1 // pred_check_branch
      %15 = sbr.rel (0) target = $region9
    $region8: #{_lambda_.1} parent=1 // pred_region
      %s17 = ssub.s32 1024, 1024
      %18 = vsyncadd [#allocation3], %s17
      %s19 = sshll.u32 [#allocation2], 4
      %s20 = int_to_ptr.vmem [resolvable:$true] %s19
      %25 = dma.hbm_to_vmem [thread:$0]  %s1, 1024, %s20, [#allocation3], 64, 64, 4
    $region9: #{_lambda_.1} parent=1 // pred_fallthru
      _
    // Predicated region
    $region10: #{_lambda_.1} parent=1 // pred_check
      _
    $region11: #{_lambda_.1} parent=1 // pred_check_branch
      %27 = sbr.rel (0) target = $region13
    $region12: #{_lambda_.1} parent=1 // pred_region
      _
    $region13: #{_lambda_.1} parent=1 // pred_fallthru
      _
    // Predicated region
    $region14: #{_lambda_.1} parent=1 // pred_check
      _
    $region15: #{_lambda_.1} parent=1 // pred_check_branch
      %29 = sbr.rel (0) target = $region17
    $region16: #{_lambda_.1} parent=1 // pred_region
      %s31 = ssub.s32 1024, 1024
      %32 = vsyncadd [#allocation5], %s31
      %s33 = sshll.u32 [#allocation4], 4
      %s34 = int_to_ptr.vmem [resolvable:$true] %s33
      %39 = dma.hbm_to_vmem [thread:$0]  %s3, 1024, %s34, [#allocation5], 64, 64, 4
    $region17: #{_lambda_.1} parent=1 // pred_fallthru
      _
    // Predicated region
    $region18: #{_lambda_.1} parent=1 // pred_check
      _
    $region19: #{_lambda_.1} parent=1 // pred_check_branch
      %41 = sbr.rel (0) target = $region21
    $region20: #{_lambda_.1} parent=1 // pred_region
      _
    $region21: #{_lambda_.1} parent=1 // pred_fallthru
      _
    // Predicated region
    $region22: #{_lambda_.1} parent=1 // pred_check
      _
    $region23: #{_lambda_.1} parent=1 // pred_check_branch
      %43 = sbr.rel (0) target = $region25
    $region24: #{_lambda_.1} parent=1 // pred_region
      %44 = dma.done [#allocation3], 1024
    $region25: #{_lambda_.1} parent=1 // pred_fallthru
      _
    // Predicated region
    $region26: #{_lambda_.1} parent=1 // pred_check
      _
    $region27: #{_lambda_.1} parent=1 // pred_check_branch
      %46 = sbr.rel (0) target = $region29
    $region28: #{_lambda_.1} parent=1 // pred_region
      %47 = dma.done [#allocation5], 1024
    $region29: #{_lambda_.1} parent=1 // pred_fallthru
      _
    %v49 = vld [vmem:[%s0] sm:$0xff]
    %v50 = vld [vmem:[%s0 + $0x8] sm:$0xff]
    %v51 = vpack.c.bf16 %v50, %v49
    %v52 = vld [vmem:[#allocation2] sm:$0xf]
    %v53 = vld [vmem:[#allocation2 + $0x4] sm:$0xf]
    %v54 = vld [vmem:[#allocation2 + $0x8] sm:$0xf]
    %v55 = vld [vmem:[#allocation2 + $0xc] sm:$0xf]
    %v56 = vld [vmem:[#allocation2 + $0x10] sm:$0xf]
    %v57 = vld [vmem:[#allocation2 + $0x14] sm:$0xf]
    %v58 = vld [vmem:[#allocation2 + $0x18] sm:$0xf]
    %v59 = vld [vmem:[#allocation2 + $0x1c] sm:$0xf]
    %v60 = vld [vmem:[#allocation2 + $0x20] sm:$0xf]
    %v61 = vld [vmem:[#allocation2 + $0x24] sm:$0xf]
    %v62 = vld [vmem:[#allocation2 + $0x28] sm:$0xf]
    %v63 = vld [vmem:[#allocation2 + $0x2c] sm:$0xf]
    %v64 = vld [vmem:[#allocation2 + $0x30] sm:$0xf]
    %v65 = vld [vmem:[#allocation2 + $0x34] sm:$0xf]
    %v66 = vld [vmem:[#allocation2 + $0x38] sm:$0xf]
    %v67 = vld [vmem:[#allocation2 + $0x3c] sm:$0xf]
    %v68 = vld [vmem:[%s2] sm:$0x1]
    %v70 = vlaneseq
    %v71 = vshrl.u32 %v70, 7
    %v72 = vsub.s32 0, %v71
    %v73 = vrot.slane %v68, %v72
    %v91 = vunpack.c.l.b16 %v52
    %v92 = vunpack.c.l.b16 %v53
    %v93 = vunpack.c.l.b16 %v54
    %v94 = vunpack.c.l.b16 %v55
    %v95 = vunpack.c.l.b16 %v56
    %v96 = vunpack.c.l.b16 %v57
    %v97 = vunpack.c.l.b16 %v58
    %v98 = vunpack.c.l.b16 %v59
    %v99 = vunpack.c.l.b16 %v60
    %v100 = vunpack.c.l.b16 %v61
    %v101 = vunpack.c.l.b16 %v62
    %v102 = vunpack.c.l.b16 %v63
    %v103 = vunpack.c.l.b16 %v64
    %v104 = vunpack.c.l.b16 %v65
    %v105 = vunpack.c.l.b16 %v66
    %v106 = vunpack.c.l.b16 %v67
    %v107 = vpack.c.b16 %v92, %v91
    %v108 = vpack.c.b16 %v94, %v93
    %v109 = vpack.c.b16 %v96, %v95
    %v110 = vpack.c.b16 %v98, %v97
    %v111 = vpack.c.b16 %v100, %v99
    %v112 = vpack.c.b16 %v102, %v101
    %v113 = vpack.c.b16 %v104, %v103
    %v114 = vpack.c.b16 %v106, %v105
    %123 = vmatprep.subr.bf16.mxu0 0
    %124 = vmatpush1.bf16.msra.mxu0 %v107
    %125 = vmatprep.subr.bf16.mxu0 0
    %126 = vmatpush1.bf16.msra.mxu0 %v108
    %127 = vmatprep.subr.bf16.mxu0 0
    %128 = vmatpush1.bf16.msra.mxu0 %v109
    %129 = vmatprep.subr.bf16.mxu0 0
    %130 = vmatpush1.bf16.msra.mxu0 %v110
    %131 = vmatprep.subr.bf16.mxu0 0
    %132 = vmatpush1.bf16.msra.mxu0 %v111
    %133 = vmatprep.subr.bf16.mxu0 0
    %134 = vmatpush1.bf16.msra.mxu0 %v112
    %135 = vmatprep.subr.bf16.mxu0 0
    %136 = vmatpush1.bf16.msra.mxu0 %v113
    %137 = vmatprep.subr.bf16.mxu0 0
    %138 = vmatpush1.bf16.msra.mxu0 %v114
    %139 = vmatprep.subr.bf16.mxu0 0
    %140 = vmatpush1.bf16.msra.mxu0 0
    %141 = vmatprep.subr.bf16.mxu0 0
    %142 = vmatpush1.bf16.msra.mxu0 0
    %143 = vmatprep.subr.bf16.mxu0 0
    %144 = vmatpush1.bf16.msra.mxu0 0
    %145 = vmatprep.subr.bf16.mxu0 0
    %146 = vmatpush1.bf16.msra.mxu0 0
    %147 = vmatprep.subr.bf16.mxu0 0
    %148 = vmatpush1.bf16.msra.mxu0 0
    %149 = vmatprep.subr.bf16.mxu0 0
    %150 = vmatpush1.bf16.msra.mxu0 0
    %151 = vmatprep.subr.bf16.mxu0 0
    %152 = vmatpush1.bf16.msra.mxu0 0
    %153 = vmatprep.subr.bf16.mxu0 0
    %154 = vmatpush1.bf16.msra.mxu0 0
    %155 = vmatprep.mubr.bf16.mxu0 0
    %156 = vmatmul.mubr.bf16.gmra.mrb[0].mxu0 %v51
    %v157 = vpop.f32.mrb[0].mxu0
    %v158 = vadd.f32 %v73, %v157
    %v159 = vpop.f32.mrb[0].mxu0
    %v160 = vpop.f32.mrb[0].mxu0
    %v161 = vadd.f32 %v73, %v160
    %v162 = vpop.f32.mrb[0].mxu0
    %163 = vdwg.mxu0
    %v164 = vmul.f32 %v158, 0.5
    %v165 = vmul.f32 %v161, 0.5
    %v166 = vmul.f32 %v158, 0.70710677
    %v167 = vmul.f32 %v161, 0.70710677
    %v168 = verf.f32.pop %v166
    %v169 = verf.f32.pop %v167
    %v170 = vadd.f32 %v168, 1.0
    %v171 = vadd.f32 %v169, 1.0
    %v172 = vmul.f32 %v164, %v170
    %v173 = vmul.f32 %v165, %v171
    %v174 = vpack.c.bf16 %v173, %v172
    %v175 = vld [vmem:[#allocation4] sm:$0xf]
    %v176 = vld [vmem:[#allocation4 + $0x4] sm:$0xf]
    %v177 = vld [vmem:[#allocation4 + $0x8] sm:$0xf]
    %v178 = vld [vmem:[#allocation4 + $0xc] sm:$0xf]
    %v179 = vld [vmem:[#allocation4 + $0x10] sm:$0xf]
    %v180 = vld [vmem:[#allocation4 + $0x14] sm:$0xf]
    %v181 = vld [vmem:[#allocation4 + $0x18] sm:$0xf]
    %v182 = vld [vmem:[#allocation4 + $0x1c] sm:$0xf]
    %v183 = vld [vmem:[#allocation4 + $0x20] sm:$0xf]
    %v184 = vld [vmem:[#allocation4 + $0x24] sm:$0xf]
    %v185 = vld [vmem:[#allocation4 + $0x28] sm:$0xf]
    %v186 = vld [vmem:[#allocation4 + $0x2c] sm:$0xf]
    %v187 = vld [vmem:[#allocation4 + $0x30] sm:$0xf]
    %v188 = vld [vmem:[#allocation4 + $0x34] sm:$0xf]
    %v189 = vld [vmem:[#allocation4 + $0x38] sm:$0xf]
    %v190 = vld [vmem:[#allocation4 + $0x3c] sm:$0xf]
    %v191 = vld [vmem:[%s4] sm:$0x1]
    %v193 = vlaneseq
    %v194 = vshrl.u32 %v193, 7
    %v195 = vsub.s32 0, %v194
    %v196 = vrot.slane %v191, %v195
    %v214 = vunpack.c.l.b16 %v175
    %v215 = vunpack.c.l.b16 %v176
    %v216 = vunpack.c.l.b16 %v177
    %v217 = vunpack.c.l.b16 %v178
    %v218 = vunpack.c.l.b16 %v179
    %v219 = vunpack.c.l.b16 %v180
    %v220 = vunpack.c.l.b16 %v181
    %v221 = vunpack.c.l.b16 %v182
    %v222 = vunpack.c.l.b16 %v183
    %v223 = vunpack.c.l.b16 %v184
    %v224 = vunpack.c.l.b16 %v185
    %v225 = vunpack.c.l.b16 %v186
    %v226 = vunpack.c.l.b16 %v187
    %v227 = vunpack.c.l.b16 %v188
    %v228 = vunpack.c.l.b16 %v189
    %v229 = vunpack.c.l.b16 %v190
    %v230 = vpack.c.b16 %v215, %v214
    %v231 = vpack.c.b16 %v217, %v216
    %v232 = vpack.c.b16 %v219, %v218
    %v233 = vpack.c.b16 %v221, %v220
    %v234 = vpack.c.b16 %v223, %v222
    %v235 = vpack.c.b16 %v225, %v224
    %v236 = vpack.c.b16 %v227, %v226
    %v237 = vpack.c.b16 %v229, %v228
    %246 = vmatprep.subr.bf16.mxu0 0
    %247 = vmatpush1.bf16.msra.mxu0 %v230
    %248 = vmatprep.subr.bf16.mxu0 0
    %249 = vmatpush1.bf16.msra.mxu0 %v231
    %250 = vmatprep.subr.bf16.mxu0 0
    %251 = vmatpush1.bf16.msra.mxu0 %v232
    %252 = vmatprep.subr.bf16.mxu0 0
    %253 = vmatpush1.bf16.msra.mxu0 %v233
    %254 = vmatprep.subr.bf16.mxu0 0
    %255 = vmatpush1.bf16.msra.mxu0 %v234
    %256 = vmatprep.subr.bf16.mxu0 0
    %257 = vmatpush1.bf16.msra.mxu0 %v235
    %258 = vmatprep.subr.bf16.mxu0 0
    %259 = vmatpush1.bf16.msra.mxu0 %v236
    %260 = vmatprep.subr.bf16.mxu0 0
    %261 = vmatpush1.bf16.msra.mxu0 %v237
    %262 = vmatprep.subr.bf16.mxu0 0
    %263 = vmatpush1.bf16.msra.mxu0 0
    %264 = vmatprep.subr.bf16.mxu0 0
    %265 = vmatpush1.bf16.msra.mxu0 0
    %266 = vmatprep.subr.bf16.mxu0 0
    %267 = vmatpush1.bf16.msra.mxu0 0
    %268 = vmatprep.subr.bf16.mxu0 0
    %269 = vmatpush1.bf16.msra.mxu0 0
    %270 = vmatprep.subr.bf16.mxu0 0
    %271 = vmatpush1.bf16.msra.mxu0 0
    %272 = vmatprep.subr.bf16.mxu0 0
    %273 = vmatpush1.bf16.msra.mxu0 0
    %274 = vmatprep.subr.bf16.mxu0 0
    %275 = vmatpush1.bf16.msra.mxu0 0
    %276 = vmatprep.subr.bf16.mxu0 0
    %277 = vmatpush1.bf16.msra.mxu0 0
    %278 = vmatprep.mubr.bf16.mxu0 0
    %279 = vmatmul.mubr.bf16.gmra.mrb[0].mxu0 %v174
    %v280 = vpop.f32.mrb[0].mxu0
    %v281 = vadd.f32 %v196, %v280
    %v282 = vpop.f32.mrb[0].mxu0
    %v283 = vpop.f32.mrb[0].mxu0
    %v284 = vadd.f32 %v196, %v283
    %v285 = vpop.f32.mrb[0].mxu0
    %286 = vdwg.mxu0
    %287 = vst [vmem:[%s5] sm:$0xff] %v281
    %288 = vst [vmem:[%s5 + $0x8] sm:$0xff] %v284
    // Predicated region
    $region30: #{_lambda_.1} parent=1 // pred_check
      _
    $region31: #{_lambda_.1} parent=1 // pred_check_branch
      %290 = sbr.rel (0) target = $region33
    $region32: #{_lambda_.1} parent=1 // pred_region
      _
    $region33: #{_lambda_.1} parent=1 // pred_fallthru
      _
    // Predicated region
    $region34: #{_lambda_.1} parent=1 // pred_check
      _
    $region35: #{_lambda_.1} parent=1 // pred_check_branch
      %292 = sbr.rel (0) target = $region37
    $region36: #{_lambda_.1} parent=1 // pred_region
      _
    $region37: #{_lambda_.1} parent=1 // pred_fallthru
      _
    %293 = vsyncpa [#allocation3], 1
    %294 = vsyncpa [#allocation5], 1

</llo_original>
